<compile_context>
chip_gen: v5e
topology: v5e:2x2
jax: 0.10.0
libtpu: 0.0.40
codegen_flags: <defaults>
</compile_context>

<pallas_src>
import math
import jax
import jax.numpy as jnp
from jax.experimental import pallas as pl
from jax.experimental.pallas import tpu as pltpu

BN_EPS = 1e-5
LEAKY_SLOPE = 0.01  # PyTorch F.leaky_relu default


def _make_fused_mlp_kernel(n_hidden):
    """Kernel refs: (x, [w_i, gamma_i, beta_i] * n_hidden, w_last, b_last, out)."""

    def kernel(*refs):
        x_ref = refs[0]
        w_last_ref = refs[1 + 3 * n_hidden]
        b_last_ref = refs[2 + 3 * n_hidden]
        o_ref = refs[3 + 3 * n_hidden]

        inv_b = 1.0 / x_ref.shape[0]  # static batch size -> compile-time constant
        h = x_ref[...]

        for i in range(n_hidden):
            w_ref = refs[1 + 3 * i]
            g_ref = refs[2 + 3 * i]
            be_ref = refs[3 + 3 * i]

            # MXU matmul, f32 accumulate (hidden Linear bias cancelled by BN).
            y = jnp.dot(h, w_ref[...], preferred_element_type=jnp.float32)

            # BatchNorm1d training mode: batch mean / biased batch variance,
            # affine gamma/beta folded into the scale/shift.
            mean = jnp.sum(y, axis=0, keepdims=True) * inv_b
            ctr = y - mean
            var = jnp.sum(ctr * ctr, axis=0, keepdims=True) * inv_b
            scale = jax.lax.rsqrt(var + BN_EPS) * g_ref[...]  # EUP rsqrt
            y_hat = ctr * scale + be_ref[...]

            # LeakyReLU: single VPU select on the normalized value.
            h = jnp.where(y_hat >= 0, y_hat, LEAKY_SLOPE * y_hat)

        # Final layer: plain Linear with bias, stored at true (B, out_dim).
        o_ref[...] = (
            jnp.dot(h, w_last_ref[...], preferred_element_type=jnp.float32)
            + b_last_ref[...]
        )

    return kernel


def init_mlp_params(key, linear):
    """Mirror nn.Linear / nn.BatchNorm1d init, no padding.

    Linear: W (out, in), b (out,), both U(-1/sqrt(in), 1/sqrt(in)); weights are
    stored transposed (in, out). BatchNorm1d: gamma=1, beta=0, stored (1, out)
    so they broadcast over the batch. Hidden Linear biases are not created
    (train-mode BN mean subtraction cancels them exactly).
    """
    n_layers = len(linear) - 1
    layers = []
    for ind in range(n_layers):
        fan_in, fan_out = linear[ind], linear[ind + 1]
        key, kw, kb = jax.random.split(key, 3)
        bound = 1.0 / math.sqrt(fan_in)
        w_t = jax.random.uniform(
            kw, (fan_out, fan_in), jnp.float32, -bound, bound
        ).T  # (in, out)
        if ind == n_layers - 1:
            b = jax.random.uniform(kb, (1, fan_out), jnp.float32, -bound, bound)
            layers.append({"w": w_t, "b": b})
        else:
            layers.append(
                {
                    "w": w_t,
                    "gamma": jnp.ones((1, fan_out), jnp.float32),
                    "beta": jnp.zeros((1, fan_out), jnp.float32),
                }
            )
    return {"layers": layers, "out_dim": linear[-1]}


def mlp_forward(x, params):
    # NOTE: if this MLP is applied to many small batches, concatenate their rows
    # and make ONE call -- fixed launch + weight-DMA cost dominates at M=8.
    layers = params["layers"]
    n_hidden = len(layers) - 1

    inputs = [x]
    for lyr in layers[:-1]:
        inputs += [lyr["w"], lyr["gamma"], lyr["beta"]]
    inputs += [layers[-1]["w"], layers[-1]["b"]]

    B = x.shape[0]
    out_dim = params["out_dim"]
    vmem_spec = pl.BlockSpec(memory_space=pltpu.MemorySpace.VMEM)

    return pl.pallas_call(
        _make_fused_mlp_kernel(n_hidden),
        out_shape=jax.ShapeDtypeStruct((B, out_dim), jnp.float32),
        in_specs=[vmem_spec] * len(inputs),
        out_specs=vmem_spec,
    )(*inputs)


def _mlp_reference(x, params):
    """Pure-jnp reference with identical params for a correctness check."""
    layers = params["layers"]
    h = x
    for i, lyr in enumerate(layers):
        if i != len(layers) - 1:
            y = h @ lyr["w"]
            mean = jnp.mean(y, axis=0, keepdims=True)
            var = jnp.mean((y - mean) ** 2, axis=0, keepdims=True)
            y_hat = (y - mean) * jax.lax.rsqrt(var + BN_EPS) * lyr["gamma"] + lyr["beta"]
            h = jnp.where(y_hat >= 0, y_hat, LEAKY_SLOPE * y_hat)
        else:
            h = h @ lyr["w"] + lyr["b"]
    return h


if __name__ == "__main__":
    linear = [16, 32, 32, 8]  # MLP([16, 32, 32, 8])
    key = jax.random.PRNGKey(0)
    key, kx = jax.random.split(key)
    batch = 8
    x = jax.random.normal(kx, (batch, linear[0]), jnp.float32)

    params = init_mlp_params(key, linear)
    out = jax.block_until_ready(mlp_forward(x, params))
    assert out.shape == (batch, linear[-1])

    ref = jax.block_until_ready(_mlp_reference(x, params))
    assert jnp.allclose(out, ref, atol=1e-4, rtol=1e-4)
    print("KERNEL_OK")
</pallas_src>

<mosaic_0001>
module attributes {stable_mosaic.version = 11 : i64} {
  func.func @kernel(%arg0: memref<8x16xf32, #tpu.memory_space<vmem>>, %arg1: memref<16x32xf32, #tpu.memory_space<vmem>>, %arg2: memref<1x32xf32, #tpu.memory_space<vmem>>, %arg3: memref<1x32xf32, #tpu.memory_space<vmem>>, %arg4: memref<32x32xf32, #tpu.memory_space<vmem>>, %arg5: memref<1x32xf32, #tpu.memory_space<vmem>>, %arg6: memref<1x32xf32, #tpu.memory_space<vmem>>, %arg7: memref<32x8xf32, #tpu.memory_space<vmem>>, %arg8: memref<1x8xf32, #tpu.memory_space<vmem>>, %arg9: memref<8x8xf32, #tpu.memory_space<vmem>>) attributes {dimension_semantics = [], scalar_prefetch = 0 : i64, scratch_operands = 0 : i64, tpu.core_type = #tpu.core_type<tc>} {
    %c0 = arith.constant 0 : index
    %c0_0 = arith.constant 0 : index
    %0 = vector.load %arg0[%c0, %c0_0] : memref<8x16xf32, #tpu.memory_space<vmem>>, vector<8x16xf32>
    %c0_1 = arith.constant 0 : index
    %c0_2 = arith.constant 0 : index
    %1 = vector.load %arg1[%c0_1, %c0_2] : memref<16x32xf32, #tpu.memory_space<vmem>>, vector<16x32xf32>
    %cst = arith.constant dense<0.000000e+00> : vector<8x32xf32>
    %2 = tpu.matmul %0, %1, %cst {dimension_numbers = #tpu.dot_dimension_numbers<[1], [0], [0], [1], [0, 0, 1, 1], [], []>} : vector<8x16xf32>, vector<16x32xf32>, vector<8x32xf32> -> vector<8x32xf32>
    %cst_3 = arith.constant dense<0.000000e+00> : vector<32xf32>
    %3 = vector.multi_reduction <add>, %2, %cst_3 [0] : vector<8x32xf32> to vector<32xf32>
    %4 = vector.shape_cast %3 : vector<32xf32> to vector<1x32xf32>
    %cst_4 = arith.constant 1.250000e-01 : f32
    %5 = vector.broadcast %cst_4 : f32 to vector<1x32xf32>
    %6 = arith.mulf %4, %5 : vector<1x32xf32>
    %7 = vector.broadcast %6 : vector<1x32xf32> to vector<8x32xf32>
    %8 = arith.subf %2, %7 : vector<8x32xf32>
    %9 = arith.mulf %8, %8 : vector<8x32xf32>
    %cst_5 = arith.constant dense<0.000000e+00> : vector<32xf32>
    %10 = vector.multi_reduction <add>, %9, %cst_5 [0] : vector<8x32xf32> to vector<32xf32>
    %11 = vector.shape_cast %10 : vector<32xf32> to vector<1x32xf32>
    %cst_6 = arith.constant 1.250000e-01 : f32
    %12 = vector.broadcast %cst_6 : f32 to vector<1x32xf32>
    %13 = arith.mulf %11, %12 : vector<1x32xf32>
    %cst_7 = arith.constant 9.99999974E-6 : f32
    %14 = vector.broadcast %cst_7 : f32 to vector<1x32xf32>
    %15 = arith.addf %13, %14 : vector<1x32xf32>
    %16 = math.rsqrt %15 : vector<1x32xf32>
    %c0_8 = arith.constant 0 : index
    %c0_9 = arith.constant 0 : index
    %17 = vector.load %arg2[%c0_8, %c0_9] : memref<1x32xf32, #tpu.memory_space<vmem>>, vector<1x32xf32>
    %18 = arith.mulf %16, %17 : vector<1x32xf32>
    %19 = vector.broadcast %18 : vector<1x32xf32> to vector<8x32xf32>
    %20 = arith.mulf %8, %19 : vector<8x32xf32>
    %c0_10 = arith.constant 0 : index
    %c0_11 = arith.constant 0 : index
    %21 = vector.load %arg3[%c0_10, %c0_11] : memref<1x32xf32, #tpu.memory_space<vmem>>, vector<1x32xf32>
    %22 = vector.broadcast %21 : vector<1x32xf32> to vector<8x32xf32>
    %23 = arith.addf %20, %22 : vector<8x32xf32>
    %cst_12 = arith.constant 0.000000e+00 : f32
    %24 = vector.broadcast %cst_12 : f32 to vector<8x32xf32>
    %25 = arith.cmpf oge, %23, %24 : vector<8x32xf32>
    %cst_13 = arith.constant 0.00999999977 : f32
    %26 = vector.broadcast %cst_13 : f32 to vector<8x32xf32>
    %27 = arith.mulf %26, %23 : vector<8x32xf32>
    %28 = arith.select %25, %23, %27 : vector<8x32xi1>, vector<8x32xf32>
    %c0_14 = arith.constant 0 : index
    %c0_15 = arith.constant 0 : index
    %29 = vector.load %arg4[%c0_14, %c0_15] : memref<32x32xf32, #tpu.memory_space<vmem>>, vector<32x32xf32>
    %cst_16 = arith.constant dense<0.000000e+00> : vector<8x32xf32>
    %30 = tpu.matmul %28, %29, %cst_16 {dimension_numbers = #tpu.dot_dimension_numbers<[1], [0], [0], [1], [0, 0, 1, 1], [], []>} : vector<8x32xf32>, vector<32x32xf32>, vector<8x32xf32> -> vector<8x32xf32>
    %cst_17 = arith.constant dense<0.000000e+00> : vector<32xf32>
    %31 = vector.multi_reduction <add>, %30, %cst_17 [0] : vector<8x32xf32> to vector<32xf32>
    %32 = vector.shape_cast %31 : vector<32xf32> to vector<1x32xf32>
    %cst_18 = arith.constant 1.250000e-01 : f32
    %33 = vector.broadcast %cst_18 : f32 to vector<1x32xf32>
    %34 = arith.mulf %32, %33 : vector<1x32xf32>
    %35 = vector.broadcast %34 : vector<1x32xf32> to vector<8x32xf32>
    %36 = arith.subf %30, %35 : vector<8x32xf32>
    %37 = arith.mulf %36, %36 : vector<8x32xf32>
    %cst_19 = arith.constant dense<0.000000e+00> : vector<32xf32>
    %38 = vector.multi_reduction <add>, %37, %cst_19 [0] : vector<8x32xf32> to vector<32xf32>
    %39 = vector.shape_cast %38 : vector<32xf32> to vector<1x32xf32>
    %cst_20 = arith.constant 1.250000e-01 : f32
    %40 = vector.broadcast %cst_20 : f32 to vector<1x32xf32>
    %41 = arith.mulf %39, %40 : vector<1x32xf32>
    %cst_21 = arith.constant 9.99999974E-6 : f32
    %42 = vector.broadcast %cst_21 : f32 to vector<1x32xf32>
    %43 = arith.addf %41, %42 : vector<1x32xf32>
    %44 = math.rsqrt %43 : vector<1x32xf32>
    %c0_22 = arith.constant 0 : index
    %c0_23 = arith.constant 0 : index
    %45 = vector.load %arg5[%c0_22, %c0_23] : memref<1x32xf32, #tpu.memory_space<vmem>>, vector<1x32xf32>
    %46 = arith.mulf %44, %45 : vector<1x32xf32>
    %47 = vector.broadcast %46 : vector<1x32xf32> to vector<8x32xf32>
    %48 = arith.mulf %36, %47 : vector<8x32xf32>
    %c0_24 = arith.constant 0 : index
    %c0_25 = arith.constant 0 : index
    %49 = vector.load %arg6[%c0_24, %c0_25] : memref<1x32xf32, #tpu.memory_space<vmem>>, vector<1x32xf32>
    %50 = vector.broadcast %49 : vector<1x32xf32> to vector<8x32xf32>
    %51 = arith.addf %48, %50 : vector<8x32xf32>
    %cst_26 = arith.constant 0.000000e+00 : f32
    %52 = vector.broadcast %cst_26 : f32 to vector<8x32xf32>
    %53 = arith.cmpf oge, %51, %52 : vector<8x32xf32>
    %cst_27 = arith.constant 0.00999999977 : f32
    %54 = vector.broadcast %cst_27 : f32 to vector<8x32xf32>
    %55 = arith.mulf %54, %51 : vector<8x32xf32>
    %56 = arith.select %53, %51, %55 : vector<8x32xi1>, vector<8x32xf32>
    %c0_28 = arith.constant 0 : index
    %c0_29 = arith.constant 0 : index
    %57 = vector.load %arg7[%c0_28, %c0_29] : memref<32x8xf32, #tpu.memory_space<vmem>>, vector<32x8xf32>
    %cst_30 = arith.constant dense<0.000000e+00> : vector<8x8xf32>
    %58 = tpu.matmul %56, %57, %cst_30 {dimension_numbers = #tpu.dot_dimension_numbers<[1], [0], [0], [1], [0, 0, 1, 1], [], []>} : vector<8x32xf32>, vector<32x8xf32>, vector<8x8xf32> -> vector<8x8xf32>
    %c0_31 = arith.constant 0 : index
    %c0_32 = arith.constant 0 : index
    %59 = vector.load %arg8[%c0_31, %c0_32] : memref<1x8xf32, #tpu.memory_space<vmem>>, vector<1x8xf32>
    %60 = vector.broadcast %59 : vector<1x8xf32> to vector<8x8xf32>
    %61 = arith.addf %58, %60 : vector<8x8xf32>
    %c0_33 = arith.constant 0 : index
    %c0_34 = arith.constant 0 : index
    %62 = vector.load %arg9[%c0_33, %c0_34] : memref<8x8xf32, #tpu.memory_space<vmem>>, vector<8x8xf32>
    tpu.vector_store %arg9[%c0_33, %c0_34], %61 {strides = array<i32>} : memref<8x8xf32, #tpu.memory_space<vmem>>, vector<8x8xf32>,
    return
  }
}

</mosaic_0001>

<llo_original>
// kernel: tpu_custom_call.1
$region0: #{tpu_custom_call.1}
  #allocation0 [shape = 'u32[]', space=smem, size = 0x4, offset = 0x4, fixed_abs, tag = 'smem constant byte address 0x4 - core index']
  #allocation1 [shape = 'u32[72,128]{1,0:T(1,128)}', space=vmem, size = 0x9000, scoped, tag = 'internal scratch']
  %s0 = inlined_call_operand.vmem [shape: f32[8,16], index: 0, kind: input, shape index: {}]
  %s1 = inlined_call_operand.hbm [shape: f32[16,32], index: 1, kind: input, shape index: {}]
  %s2 = inlined_call_operand.vmem [shape: f32[1,32], index: 2, kind: input, shape index: {}]
  %s3 = inlined_call_operand.vmem [shape: f32[1,32], index: 3, kind: input, shape index: {}]
  %s4 = inlined_call_operand.vmem [shape: f32[32,32], index: 4, kind: input, shape index: {}]
  %s5 = inlined_call_operand.vmem [shape: f32[1,32], index: 5, kind: input, shape index: {}]
  %s6 = inlined_call_operand.vmem [shape: f32[1,32], index: 6, kind: input, shape index: {}]
  %s7 = inlined_call_operand.vmem [shape: f32[32,8], index: 7, kind: input, shape index: {}]
  %s8 = inlined_call_operand.vmem [shape: f32[1,8], index: 8, kind: input, shape index: {}]
  %s9 = inlined_call_operand.hbm [shape: f32[8,8], index: 9, kind: output, shape index: {}]
  %s10 = sld [smem:[#allocation0]]
  $region50: #{tpu_custom_call.1} parent=0
    _
  %s12 = ssub.s32 1, %s10
  %s13 = scalar_select 0, %s12, %s10
  $region1: #{tpu_custom_call.1} parent=0
    #allocation2 [shape = 'u8[8192]{0}', space=vmem, size = 0x2000, scoped, tag = 'input window, operand 1, single buffered']
    #allocation3 [shape = 's32[1]{0}', space=sflag, size = 0x4, scoped, tag = 'scoped memory for tpu_custom_call.1']
    #allocation4 [shape = 's32[1]{0}', space=sflag, size = 0x4, scoped, tag = 'scoped memory for tpu_custom_call.1']
    #allocation5 [shape = 'u8[4096]{0}', space=vmem, size = 0x1000, scoped, tag = 'output window, operand 0, single buffered']
    %14 = vsyncpa [#allocation3], 0
    %15 = vsyncpa [#allocation4], 0
    // Predicated region
    $region2: #{tpu_custom_call.1} parent=1 // pred_check
      _
    $region3: #{tpu_custom_call.1} parent=1 // pred_check_branch
      %17 = sbr.rel (0) target = $region5
    $region4: #{tpu_custom_call.1} parent=1 // pred_region
      _
    $region5: #{tpu_custom_call.1} parent=1 // pred_fallthru
      _
    // Predicated region
    $region6: #{tpu_custom_call.1} parent=1 // pred_check
      _
    $region7: #{tpu_custom_call.1} parent=1 // pred_check_branch
      %19 = sbr.rel (0) target = $region9
    $region8: #{tpu_custom_call.1} parent=1 // pred_region
      %21 = vsyncadd [#allocation3], 0
      %s22 = sshll.u32 %s1, 4
      %s23 = int_to_ptr.hbm [resolvable:$true] %s22
      %s24 = sshll.u32 [#allocation2], 4
      %s25 = int_to_ptr.vmem [resolvable:$true] %s24
      %30 = dma.hbm_to_vmem [thread:$0]  %s23, 256, %s25, [#allocation3], 128, 128, 8
    $region9: #{tpu_custom_call.1} parent=1 // pred_fallthru
      _
    // Predicated region
    $region10: #{tpu_custom_call.1} parent=1 // pred_check
      _
    $region11: #{tpu_custom_call.1} parent=1 // pred_check_branch
      %32 = sbr.rel (0) target = $region13
    $region12: #{tpu_custom_call.1} parent=1 // pred_region
      _
    $region13: #{tpu_custom_call.1} parent=1 // pred_fallthru
      _
    // Predicated region
    $region14: #{tpu_custom_call.1} parent=1 // pred_check
      _
    $region15: #{tpu_custom_call.1} parent=1 // pred_check_branch
      %34 = sbr.rel (0) target = $region17
    $region16: #{tpu_custom_call.1} parent=1 // pred_region
      _
    $region17: #{tpu_custom_call.1} parent=1 // pred_fallthru
      _
    // Predicated region
    $region18: #{tpu_custom_call.1} parent=1 // pred_check
      _
    $region19: #{tpu_custom_call.1} parent=1 // pred_check_branch
      %36 = sbr.rel (0) target = $region21
    $region20: #{tpu_custom_call.1} parent=1 // pred_region
      _
    $region21: #{tpu_custom_call.1} parent=1 // pred_fallthru
      _
    // Predicated region
    $region22: #{tpu_custom_call.1} parent=1 // pred_check
      _
    $region23: #{tpu_custom_call.1} parent=1 // pred_check_branch
      %38 = sbr.rel (0) target = $region25
    $region24: #{tpu_custom_call.1} parent=1 // pred_region
      _
    $region25: #{tpu_custom_call.1} parent=1 // pred_fallthru
      _
    // Predicated region
    $region26: #{tpu_custom_call.1} parent=1 // pred_check
      _
    $region27: #{tpu_custom_call.1} parent=1 // pred_check_branch
      %40 = sbr.rel (0) target = $region29
    $region28: #{tpu_custom_call.1} parent=1 // pred_region
      _
    $region29: #{tpu_custom_call.1} parent=1 // pred_fallthru
      _
    // Predicated region
    $region30: #{tpu_custom_call.1} parent=1 // pred_check
      _
    $region31: #{tpu_custom_call.1} parent=1 // pred_check_branch
      %42 = sbr.rel (0) target = $region33
    $region32: #{tpu_custom_call.1} parent=1 // pred_region
      _
    $region33: #{tpu_custom_call.1} parent=1 // pred_fallthru
      _
    // Predicated region
    $region34: #{tpu_custom_call.1} parent=1 // pred_check
      _
    $region35: #{tpu_custom_call.1} parent=1 // pred_check_branch
      %44 = sbr.rel (0) target = $region37
    $region36: #{tpu_custom_call.1} parent=1 // pred_region
      _
    $region37: #{tpu_custom_call.1} parent=1 // pred_fallthru
      _
    // Predicated region
    $region38: #{tpu_custom_call.1} parent=1 // pred_check
      _
    $region39: #{tpu_custom_call.1} parent=1 // pred_check_branch
      %46 = sbr.rel (0) target = $region41
    $region40: #{tpu_custom_call.1} parent=1 // pred_region
      %48 = dma.done [#allocation3], 256
    $region41: #{tpu_custom_call.1} parent=1 // pred_fallthru
      _
    %v49 = vld [vmem:[%s0] sm:$0xff]
    %v50 = vld [vmem:[#allocation2] sm:$0xff]
    %v51 = vld [vmem:[#allocation2 + $0x8] sm:$0xff]
    %vm52 = vcmask 130048
    %v54 = vsel %vm52, %v49, 0
    %56 = vmatpush.msra.mxu0 0.0
    %57 = vmatpush.msra.mxu0 0.0
    %58 = vmatpush.msra.mxu0 0.0
    %59 = vmatpush.msra.mxu0 0.0
    %60 = vmatpush.msra.mxu0 0.0
    %61 = vmatpush.msra.mxu0 0.0
    %62 = vmatpush.msra.mxu0 0.0
    %63 = vmatpush.msra.mxu0 0.0
    %64 = vmatpush.msra.mxu0 0.0
    %65 = vmatpush.msra.mxu0 0.0
    %66 = vmatpush.msra.mxu0 0.0
    %67 = vmatpush.msra.mxu0 0.0
    %68 = vmatpush.msra.mxu0 0.0
    %69 = vmatpush.msra.mxu0 0.0
    %70 = vmatpush.msra.mxu0 %v51
    %71 = vmatpush.msra.mxu0 %v50
    %72 = vmatmul.f32.gmra.mxu0 %v54
    %v73 = vpop.f32.mrf.mxu0
    %v74 = vadd.f32 0.0, %v73
    %75 = vdwg.mxu0
    %vm76 = vcmask 261120
    %v77 = vsel %vm76, %v74, 0.0
    %v78 = vrot.slane %v77, 4
    %v79 = vadd.f32 %v77, %v78
    %v80 = vrot.slane %v79, 2
    %v81 = vadd.f32 %v79, %v80
    %v82 = vrot.slane %v81, 1
    %v83 = vadd.f32 %v81, %v82
    %v84 = vmul.f32 %v83, 0.125
    %v85 = vsub.f32 %v74, %v84
    %v86 = vmul.f32 %v85, %v85
    %v87 = vsel %vm76, %v86, 0.0
    %v88 = vrot.slane %v87, 4
    %v89 = vadd.f32 %v87, %v88
    %v90 = vrot.slane %v89, 2
    %v91 = vadd.f32 %v89, %v90
    %v92 = vrot.slane %v91, 1
    %v93 = vadd.f32 %v91, %v92
    %v94 = vmul.f32 %v93, 0.125
    %v95 = vadd.f32 %v94, 1e-05
    %v96 = vrsqrt.pop %v95
    %v97 = vmul.f32 %v96, %v95
    %v98 = vmul.f32 %v97, %v96
    %v99 = vmul.f32 0.5, %v98
    %v100 = vsub.f32 1.5, %v99
    %v101 = vmul.f32 %v96, %v100
    %vm102 = vweird.f32 %v95
    %vm103 = vweird.f32 %v96
    %vm104 = vmor %vm102, %vm103
    %v105 = vsel %vm104, %v96, %v101
    %v106 = vld [vmem:[%s2] sm:$0x1]
    %v107 = vmul.f32 %v105, %v106
    %v108 = vperm.slane %v107, 0
    %v109 = vmul.f32 %v85, %v108
    %v110 = vld [vmem:[%s3] sm:$0x1]
    %v112 = vperm.slane %v110, 0
    %v114 = vadd.f32 %v109, %v112
    %vm115 = vcmp.ge.f32.partialorder %v114, 0.0
    %v116 = vmul.f32 %v114, 0.01
    %v117 = vsel %vm115, %v114, %v116
    %v118 = vld [vmem:[%s4] sm:$0xff]
    %v119 = vld [vmem:[%s4 + $0x8] sm:$0xff]
    %v120 = vld [vmem:[%s4 + $0x10] sm:$0xff]
    %v121 = vld [vmem:[%s4 + $0x18] sm:$0xff]
    %v123 = vsel %vm76, %v117, 0
    %125 = vmatpush.msra.mxu0 0.0
    %126 = vmatpush.msra.mxu0 0.0
    %127 = vmatpush.msra.mxu0 0.0
    %128 = vmatpush.msra.mxu0 0.0
    %129 = vmatpush.msra.mxu0 0.0
    %130 = vmatpush.msra.mxu0 0.0
    %131 = vmatpush.msra.mxu0 0.0
    %132 = vmatpush.msra.mxu0 0.0
    %133 = vmatpush.msra.mxu0 0.0
    %134 = vmatpush.msra.mxu0 0.0
    %135 = vmatpush.msra.mxu0 0.0
    %136 = vmatpush.msra.mxu0 0.0
    %137 = vmatpush.msra.mxu0 %v121
    %138 = vmatpush.msra.mxu0 %v120
    %139 = vmatpush.msra.mxu0 %v119
    %140 = vmatpush.msra.mxu0 %v118
    %141 = vmatmul.f32.gmra.mxu0 %v123
    %v142 = vpop.f32.mrf.mxu0
    %v143 = vadd.f32 0.0, %v142
    %144 = vdwg.mxu0
    %v145 = vsel %vm76, %v143, 0.0
    %v146 = vrot.slane %v145, 4
    %v147 = vadd.f32 %v145, %v146
    %v148 = vrot.slane %v147, 2
    %v149 = vadd.f32 %v147, %v148
    %v150 = vrot.slane %v149, 1
    %v151 = vadd.f32 %v149, %v150
    %v152 = vmul.f32 %v151, 0.125
    %v153 = vsub.f32 %v143, %v152
    %v154 = vmul.f32 %v153, %v153
    %v155 = vsel %vm76, %v154, 0.0
    %v156 = vrot.slane %v155, 4
    %v157 = vadd.f32 %v155, %v156
    %v158 = vrot.slane %v157, 2
    %v159 = vadd.f32 %v157, %v158
    %v160 = vrot.slane %v159, 1
    %v161 = vadd.f32 %v159, %v160
    %v162 = vmul.f32 %v161, 0.125
    %v163 = vadd.f32 %v162, 1e-05
    %v164 = vrsqrt.pop %v163
    %v165 = vmul.f32 %v164, %v163
    %v166 = vmul.f32 %v165, %v164
    %v167 = vmul.f32 0.5, %v166
    %v168 = vsub.f32 1.5, %v167
    %v169 = vmul.f32 %v164, %v168
    %vm170 = vweird.f32 %v163
    %vm171 = vweird.f32 %v164
    %vm172 = vmor %vm170, %vm171
    %v173 = vsel %vm172, %v164, %v169
    %v174 = vld [vmem:[%s5] sm:$0x1]
    %v175 = vmul.f32 %v173, %v174
    %v176 = vperm.slane %v175, 0
    %v177 = vmul.f32 %v153, %v176
    %v178 = vld [vmem:[%s6] sm:$0x1]
    %v180 = vperm.slane %v178, 0
    %v182 = vadd.f32 %v177, %v180
    %vm183 = vcmp.ge.f32.partialorder %v182, 0.0
    %v184 = vmul.f32 %v182, 0.01
    %v185 = vsel %vm183, %v182, %v184
    %v186 = vld [vmem:[%s7] sm:$0xff]
    %v187 = vld [vmem:[%s7 + $0x8] sm:$0xff]
    %v188 = vld [vmem:[%s7 + $0x10] sm:$0xff]
    %v189 = vld [vmem:[%s7 + $0x18] sm:$0xff]
    %v190 = vld [vmem:[%s8] sm:$0x1]
    %v192 = vperm.slane %v190, 0
    %v195 = vsel %vm76, %v185, 0
    %197 = vmatpush.msra.mxu0 0.0
    %198 = vmatpush.msra.mxu0 0.0
    %199 = vmatpush.msra.mxu0 0.0
    %200 = vmatpush.msra.mxu0 0.0
    %201 = vmatpush.msra.mxu0 0.0
    %202 = vmatpush.msra.mxu0 0.0
    %203 = vmatpush.msra.mxu0 0.0
    %204 = vmatpush.msra.mxu0 0.0
    %205 = vmatpush.msra.mxu0 0.0
    %206 = vmatpush.msra.mxu0 0.0
    %207 = vmatpush.msra.mxu0 0.0
    %208 = vmatpush.msra.mxu0 0.0
    %209 = vmatpush.msra.mxu0 %v189
    %210 = vmatpush.msra.mxu0 %v188
    %211 = vmatpush.msra.mxu0 %v187
    %212 = vmatpush.msra.mxu0 %v186
    %213 = vmatmul.f32.gmra.mxu0 %v195
    %v214 = vpop.f32.mrf.mxu0
    %v215 = vadd.f32 %v192, %v214
    %216 = vdwg.mxu0
    %vm217 = vcmask 64512
    %218 = vst.msk [vmem:[#allocation5] sm:$0xff] %vm217, %v215
    // Predicated region
    $region42: #{tpu_custom_call.1} parent=1 // pred_check
      _
    $region43: #{tpu_custom_call.1} parent=1 // pred_check_branch
      %220 = sbr.rel (0) target = $region45
    $region44: #{tpu_custom_call.1} parent=1 // pred_region
      %222 = vsyncadd [#allocation4], 0
      %s224 = sshll.u32 [#allocation5], 4
      %s225 = int_to_ptr.vmem [resolvable:$true] %s224
      %s226 = sshll.u32 %s9, 4
      %s227 = int_to_ptr.hbm [resolvable:$true] %s226
      %229 = dma.vmem_to_hbm [thread:$0]  %s225, 128, %s227, [#allocation4]
    $region45: #{tpu_custom_call.1} parent=1 // pred_fallthru
      _
    // Predicated region
    $region46: #{tpu_custom_call.1} parent=1 // pred_check
      _
    $region47: #{tpu_custom_call.1} parent=1 // pred_check_branch
      %231 = sbr.rel (0) target = $region49
    $region48: #{tpu_custom_call.1} parent=1 // pred_region
      %233 = dma.done [#allocation4], 128
    $region49: #{tpu_custom_call.1} parent=1 // pred_fallthru
      _
    %234 = vsyncpa [#allocation3], 1
    %235 = vsyncpa [#allocation4], 1

</llo_original>
